<compile_context>
chip_gen: v7x
topology: tpu7x:2x2x1
jax: 0.10.0
libtpu: 0.0.40
codegen_flags: <defaults>
</compile_context>

<pallas_src>
import functools
import numpy as np

import jax
import jax.numpy as jnp
from jax import lax
from jax.experimental import pallas as pl
from jax.experimental.pallas import tpu as pltpu

_LANE = 128


# ----------------------------- in-kernel RNG helpers -----------------------------
def _drop_threshold_i32(p):
    """bits uniform over int32 [-2^31, 2^31); drop iff bits < thr -> P(drop) = p."""
    thr = int(round(p * 4294967296.0)) - 2147483648
    return max(-2147483648, min(2147483647, thr))


def _fmix32(h):
    """murmur3-style finalizer on int32 (logical shifts emulated with a mask)."""
    h = h ^ ((h >> 16) & jnp.int32(0x0000FFFF))
    h = h * jnp.int32(-2048144789)            # 0x85EBCA6B
    h = h ^ ((h >> 13) & jnp.int32(0x0007FFFF))
    h = h * jnp.int32(-1028477387)            # 0xC2B2AE35
    h = h ^ ((h >> 16) & jnp.int32(0x0000FFFF))
    return h


# ----------------------------------- kernel --------------------------------------
def _multisample_head_kernel(seed_ref,   # SMEM (1,) int32
                             x_ref,      # VMEM (TB, H)        input dtype
                             w_ref,      # VMEM (H, TC)  bf16  (module weight, pre-transposed)
                             b_ref,      # VMEM (1, TC)  f32   (module bias)
                             out_ref,    # VMEM (TB, TC)       input dtype
                             *, drop_probs, predrop, training):
    x = x_ref[...].astype(jnp.float32)

    if training:
        tb, hidden = x.shape
        # Global element index -> hash counter (independent of the C grid axis,
        # so column tiles see identical masks; independent of tiling in general).
        row = lax.broadcasted_iota(jnp.int32, (tb, hidden), 0) + pl.program_id(0) * tb
        col = lax.broadcasted_iota(jnp.int32, (tb, hidden), 1)
        flat = row * hidden + col
        base = flat * jnp.int32(-1640531535) + seed_ref[0] * jnp.int32(1000003)

        n = len(drop_probs)
        # Fused: per-sample keep-scale and the 1/N average in one where+accumulate.
        combined = jnp.zeros((tb, hidden), jnp.float32)
        for s, p in enumerate(drop_probs):          # static, unrolled
            bits = _fmix32(base + jnp.int32(s + 1))
            keep_scale = jnp.float32(1.0 / ((1.0 - p) * n))
            combined = combined + jnp.where(
                bits >= jnp.int32(_drop_threshold_i32(p)), keep_scale, jnp.float32(0.0))
        if predrop > 0.0:
            bits = _fmix32(base)
            pre = jnp.where(bits >= jnp.int32(_drop_threshold_i32(predrop)),
                            jnp.float32(1.0 / (1.0 - predrop)), jnp.float32(0.0))
            combined = combined * pre
        x = x * combined
    # eval mode: every dropout is identity -> x unchanged

    # Single bf16 MXU GEMM (f32 accumulation) for the affine head.
    out = jnp.dot(x.astype(jnp.bfloat16), w_ref[...],
                  preferred_element_type=jnp.float32) + b_ref[...]
    out_ref[...] = out.astype(out_ref.dtype)


# --------------------------------- host wrappers ---------------------------------
def prepare_head_params(weight, bias):
    """One-time prep of the Linear head (NOT in the per-call path):
    transpose (C,H)->(H,C), cast to bf16, pad C to a lane-dense multiple of 128."""
    C, H = weight.shape
    c_pad = ((C + _LANE - 1) // _LANE) * _LANE
    w_hc = jnp.asarray(weight).T.astype(jnp.bfloat16)          # (H, C)
    b = jnp.asarray(bias).astype(jnp.float32)
    if c_pad != C:
        w_hc = jnp.pad(w_hc, ((0, 0), (0, c_pad - C)))
        b = jnp.pad(b, (0, c_pad - C))
    return w_hc, b.reshape(1, c_pad), C


def _pick_tile(dim, preferred, align):
    """Largest multiple of `align` that divides `dim`, capped at `preferred`."""
    t = min(preferred, dim)
    t = (t // align) * align
    while t >= align:
        if dim % t == 0:
            return t
        t -= align
    return dim


def multisample_stable_dropout(x, w_hc, bias_row, out_features=None, *, seed=0,
                               drop_range=5, predrop=0.0, training=True,
                               block_b=None, block_c=None):
    """x: (B, H); w_hc: (H, C_pad) bf16; bias_row: (1, C_pad) f32. Returns (B, out_features)."""
    B, H = x.shape
    Hw, Cp = w_hc.shape
    assert Hw == H and bias_row.shape == (1, Cp)
    if out_features is None:
        out_features = Cp
    if drop_range * 0.1 >= 1.0:
        raise ValueError("drop_range * 0.1 must be < 1.0 (p=1 dropout is degenerate)")
    drop_probs = tuple((i + 1) * 0.1 for i in range(drop_range))

    # Batch tile: multiple of 8, ~256-512 rows for pipelining; prefer >=2 tiles
    # so v7x's two TensorCores both get a share of the 'parallel' batch axis.
    if block_b is None:
        if B < 16:
            block_b = B
        else:
            preferred = 512 if B >= 1024 else max(8, B // 2)
            block_b = _pick_tile(B, preferred, 8)
    # Column tile: lane-dense multiple of 128, capped so a W tile stays a few MiB.
    if block_c is None:
        max_c = max(_LANE, ((8 * 1024 * 1024) // (H * 2)) // _LANE * _LANE)
        block_c = _pick_tile(Cp, min(2048, max_c), _LANE)
    assert B % block_b == 0 and Cp % block_c == 0

    # Explicit VMEM budget (re-derived per tile plan; capped at v7x's 64 MiB).
    est = (2 * block_b * H * x.dtype.itemsize      # x tiles (double-buffered)
           + 2 * H * block_c * 2                   # W bf16 tiles
           + 2 * block_c * 4 * 2                   # bias tiles
           + 2 * block_b * block_c * x.dtype.itemsize  # out tiles
           + 4 * block_b * H * 4)                  # f32 temporaries headroom
    vmem_limit = int(min(64 * 1024 * 1024, max(32 * 1024 * 1024, 2 * est)))

    kernel = functools.partial(
        _multisample_head_kernel,
        drop_probs=drop_probs, predrop=float(predrop), training=bool(training))

    out = pl.pallas_call(
        kernel,
        out_shape=jax.ShapeDtypeStruct((B, Cp), x.dtype),
        grid_spec=pltpu.PrefetchScalarGridSpec(
            num_scalar_prefetch=0,
            grid=(B // block_b, Cp // block_c),
            in_specs=[
                pl.BlockSpec(memory_space=pltpu.MemorySpace.SMEM),     # seed scalar
                pl.BlockSpec((block_b, H), lambda i, j: (i, 0)),       # x tile (resident over j)
                pl.BlockSpec((H, block_c), lambda i, j: (0, j)),       # W^T column tile (bf16)
                pl.BlockSpec((1, block_c), lambda i, j: (0, j)),       # bias column tile
            ],
            out_specs=pl.BlockSpec((block_b, block_c), lambda i, j: (i, j)),
        ),
        compiler_params=pltpu.CompilerParams(
            dimension_semantics=("parallel", "parallel"),
            vmem_limit_bytes=vmem_limit),
    )(jnp.asarray([seed], jnp.int32), x, w_hc, bias_row)

    if out_features != Cp:
        out = out[:, :out_features]
    return out


# ------------------------------------- demo --------------------------------------
if __name__ == "__main__":
    # Small shapes: B=16 gives two 8-row batch tiles; C=100 exercises the
    # lane-dense pad-to-128 path; H=128 is a full lane width.
    B, H, C = 16, 128, 100
    key = jax.random.PRNGKey(0)
    kx, kw, kb = jax.random.split(key, 3)
    x = jax.random.normal(kx, (B, H), jnp.float32)
    weight = jax.random.normal(kw, (C, H), jnp.float32) * 0.05
    bias = jax.random.normal(kb, (C,), jnp.float32) * 0.1

    # One-time head-parameter prep (transpose + bf16 cast + lane padding).
    w_hc, bias_row, out_features = prepare_head_params(weight, bias)

    # 1) Eval mode: every dropout is identity -> output must equal Linear(x).
    out_eval = jax.block_until_ready(
        multisample_stable_dropout(x, w_hc, bias_row, out_features, training=False))
    ref = x @ weight.T + bias[None, :]
    np.testing.assert_allclose(np.asarray(out_eval), np.asarray(ref),
                               rtol=2e-2, atol=2e-2)   # bf16 GEMM tolerance

    # 2) Training mode: exercises the fused multisample-dropout mask path.
    #    (Callers should pass a fresh seed each training step.)
    out_train = jax.block_until_ready(
        multisample_stable_dropout(x, w_hc, bias_row, out_features, seed=1234,
                                   training=True, drop_range=5, predrop=0.0))
    assert out_train.shape == (B, C)
    assert bool(jnp.all(jnp.isfinite(out_train)))

    print("KERNEL_OK")
</pallas_src>

<mosaic_0001>
module attributes {stable_mosaic.version = 11 : i64} {
  func.func @_multisample_head_kernel(%arg0: i32, %arg1: i32, %arg2: memref<1xi32, #tpu.memory_space<smem>>, %arg3: memref<8x128xf32, #tpu.memory_space<vmem>>, %arg4: memref<128x128xbf16, #tpu.memory_space<vmem>>, %arg5: memref<1x128xf32, #tpu.memory_space<vmem>>, %arg6: memref<8x128xf32, #tpu.memory_space<vmem>>) attributes {dimension_semantics = [#tpu.dimension_semantics<parallel>, #tpu.dimension_semantics<parallel>], iteration_bounds = array<i64: 2, 1>, scalar_prefetch = 0 : i64, scratch_operands = 0 : i64, tpu.core_type = #tpu.core_type<tc>, window_params = [{transform_indices = @transform_0, window_bounds = array<i64: 1>}, {transform_indices = @transform_1, window_bounds = array<i64: 8, 128>}, {transform_indices = @transform_2, window_bounds = array<i64: 128, 128>}, {transform_indices = @transform_3, window_bounds = array<i64: 1, 128>}, {transform_indices = @transform_4, window_bounds = array<i64: 8, 128>}]} {
    %c0 = arith.constant 0 : index
    %c0_0 = arith.constant 0 : index
    %0 = vector.load %arg3[%c0, %c0_0] : memref<8x128xf32, #tpu.memory_space<vmem>>, vector<8x128xf32>
    %1 = arith.truncf %0 : vector<8x128xf32> to vector<8x128xbf16>
    %c0_1 = arith.constant 0 : index
    %c0_2 = arith.constant 0 : index
    %2 = vector.load %arg4[%c0_1, %c0_2] : memref<128x128xbf16, #tpu.memory_space<vmem>>, vector<128x128xbf16>
    %cst = arith.constant dense<0.000000e+00> : vector<8x128xf32>
    %3 = tpu.matmul %1, %2, %cst {dimension_numbers = #tpu.dot_dimension_numbers<[1], [0], [0], [1], [0, 0, 1, 1], [], []>} : vector<8x128xbf16>, vector<128x128xbf16>, vector<8x128xf32> -> vector<8x128xf32>
    %c0_3 = arith.constant 0 : index
    %c0_4 = arith.constant 0 : index
    %4 = vector.load %arg5[%c0_3, %c0_4] : memref<1x128xf32, #tpu.memory_space<vmem>>, vector<1x128xf32>
    %5 = vector.broadcast %4 : vector<1x128xf32> to vector<8x128xf32>
    %6 = arith.addf %3, %5 : vector<8x128xf32>
    %c0_5 = arith.constant 0 : index
    %c0_6 = arith.constant 0 : index
    %7 = vector.load %arg6[%c0_5, %c0_6] : memref<8x128xf32, #tpu.memory_space<vmem>>, vector<8x128xf32>
    tpu.vector_store %arg6[%c0_5, %c0_6], %6 {strides = array<i32>} : memref<8x128xf32, #tpu.memory_space<vmem>>, vector<8x128xf32>,
    return
  }
  func.func @transform_0(%arg0: i32, %arg1: i32) -> i32 {
    %c0_i32 = arith.constant 0 : i32
    %c0_i32_0 = arith.constant 0 : i32
    return %c0_i32 : i32
  }
  func.func @transform_1(%arg0: i32, %arg1: i32) -> (i32, i32) {
    %c0_i32 = arith.constant 0 : i32
    %c0_i32_0 = arith.constant 0 : i32
    return %arg0, %c0_i32 : i32, i32
  }
  func.func @transform_2(%arg0: i32, %arg1: i32) -> (i32, i32) {
    %c0_i32 = arith.constant 0 : i32
    %c0_i32_0 = arith.constant 0 : i32
    return %c0_i32, %arg1 : i32, i32
  }
  func.func @transform_3(%arg0: i32, %arg1: i32) -> (i32, i32) {
    %c0_i32 = arith.constant 0 : i32
    %c0_i32_0 = arith.constant 0 : i32
    return %c0_i32, %arg1 : i32, i32
  }
  func.func @transform_4(%arg0: i32, %arg1: i32) -> (i32, i32) {
    %c0_i32 = arith.constant 0 : i32
    return %arg0, %arg1 : i32, i32
  }
}

</mosaic_0001>

<llo_original>
// kernel: tpu_custom_call.1
$region0: #{tpu_custom_call.1}
  #allocation0 [shape = 'u32[]', space=smem, size = 0x4, offset = 0x4, fixed_abs, tag = 'smem constant byte address 0x4 - core index']
  #allocation1 [shape = 'u32[144,128]{1,0:T(1,128)}', space=vmem, size = 0x12000, scoped, tag = 'internal scratch']
  #allocation2 [shape = 's32[1]{0:T(128)S(6)}', space=smem, size = 0x200, scoped, tag = 'scoped memory for tpu_custom_call.1']
  %s0 = inlined_call_operand.<no memory space> [shape: s32[1], index: 0, kind: input, shape index: {}]
  %s1 = inlined_call_operand.hbm [shape: f32[16,128], index: 1, kind: input, shape index: {}]
  %s2 = inlined_call_operand.hbm [shape: bf16[128,128], index: 2, kind: input, shape index: {}]
  %s3 = inlined_call_operand.vmem [shape: f32[1,128], index: 3, kind: input, shape index: {}]
  %s4 = inlined_call_operand.hbm [shape: f32[16,128], index: 4, kind: output, shape index: {}]
  %s5 = sld [smem:[#allocation0]]
  $region57: #{tpu_custom_call.1} parent=0
    _
  %s7 = ssub.s32 1, %s5
  %s8 = scalar_select 0, %s7, %s5
  %9 = sst [smem:[#allocation2]] %s0
  $region1: #{tpu_custom_call.1} parent=0
    #allocation3 [shape = 'u8[8192]{0}', space=vmem, size = 0x2000, scoped, tag = 'input window, operand 1']
    #allocation4 [shape = 's32[2]{0}', space=sflag, size = 0x8, scoped, tag = 'scoped memory for tpu_custom_call.1']
    #allocation5 [shape = 's32[2]{0}', space=sflag, size = 0x8, scoped, tag = 'scoped memory for tpu_custom_call.1']
    #allocation6 [shape = 'u8[32768]{0}', space=vmem, size = 0x8000, scoped, tag = 'input window, operand 2, single buffered']
    #allocation7 [shape = 's32[1]{0}', space=sflag, size = 0x4, scoped, tag = 'scoped memory for tpu_custom_call.1']
    #allocation8 [shape = 'u8[8192]{0}', space=vmem, size = 0x2000, scoped, tag = 'output window, operand 0']
    %10 = vsyncpa [#allocation4], 0
    %s11 = scalar_lea.sflag [#allocation4], 1
    %12 = vsyncpa %s11, 0
    %13 = vsyncpa [#allocation7], 0
    %14 = vsyncpa [#allocation5], 0
    %s15 = scalar_lea.sflag [#allocation5], 1
    %16 = vsyncpa %s15, 0
    loop: start=0, step=1, limit=4
    $region2: #{tpu_custom_call.1} parent=1 // loop_pre_header
      _
    $region3: #{tpu_custom_call.1} parent=1 // loop_header
      %s18 = sphi 0, %s22
      %p19 = scmp.ge.s32.totalorder %s18, 4
      %s25 = sphi 0, %s37
      %s26 = sphi 0, %s33
      %s27 = sphi 0, %s25
      %s28 = sphi 0, %s26
      %s29 = sphi 0, %s27
      %s30 = sphi 0, %s28
      %s38 = sphi 0, %s38
      %s40 = sphi 0, %s38
      %s41 = sphi 0, %s40
      %s55 = sphi 0, %s41
      %s61 = sphi 0, %s63
      %s64 = sphi 0, %s61
      %s65 = sphi 0, %s64
      %s81 = sphi 0, %s65
      %s87 = sphi 0, %s89
      %s90 = sphi 0, %s87
      %s91 = sphi 0, %s90
      %s107 = sphi 0, %s91
      %s113 = sphi 0, %s115
      %s116 = sphi 0, %s113
      %s117 = sphi 0, %s116
      %s133 = sphi 0, %s117
      %s141 = sphi 0, %s143
      %s144 = sphi 0, %s141
      %s145 = sphi 0, %s144
      %s161 = sphi 0, %s145
    $region4: #{tpu_custom_call.1} parent=1 // loop_header_branch
      %21 = sbr.rel (%p19) target = $region8
    $region5: #{tpu_custom_call.1} parent=1 // loop_body
      %s23 = ssub.s32 %s18, 1
      %s24 = ssub.s32 %s18, 2
      %s31 = sadd.s32 1, %s26
      %p32 = scmp.ge.s32.totalorder %s31, 1
      %s33 = scalar_select %p32, 0, %s31
      %s34 = sadd.s32 1, %s25
      %s35 = scalar_select %p32, %s34, %s25
      %p36 = scmp.ge.s32.totalorder %s35, 2
      %s37 = scalar_select %p36, 0, %s35
      %s39 = sadd.s32 %s38, 1
      %p42 = scmp.eq.s32.totalorder %s18, 1
      %p43 = scmp.ne.s32.totalorder %s38, %s40
      %p44 = scmp.eq.s32.totalorder %s18, 0
      %p45 = por %p43, %p44
      %p46 = scmp.ne.s32.totalorder %s38, %s40
      %p47 = scmp.eq.s32.totalorder %s23, 1
      %p48 = por %p46, %p47
      %p49 = scmp.ne.s32.totalorder %s40, %s41
      %p50 = scmp.eq.s32.totalorder %s23, 0
      %p51 = por %p49, %p50
      %p52 = scmp.ne.s32.totalorder %s40, %s41
      %p53 = scmp.eq.s32.totalorder %s24, 1
      %p54 = por %p52, %p53
      %p56 = scmp.ne.s32.totalorder %s41, %s55
      %p57 = scmp.eq.s32.totalorder %s24, 0
      %p58 = por %p56, %p57
      %s59 = ssub.s32 %s25, %s37
      %p60 = scmp.eq.s32.totalorder %s59, 0
      %s62 = sadd.s32 %s61, 1
      %s63 = scalar_select %p60, %s61, %s62
      %p66 = pneg %p60
      %p67 = scmp.eq.s32.totalorder %s18, 1
      %p68 = por %p66, %p67
      %p69 = scmp.ne.s32.totalorder %s61, %s64
      %p70 = scmp.eq.s32.totalorder %s18, 0
      %p71 = por %p69, %p70
      %p72 = scmp.ne.s32.totalorder %s61, %s64
      %p73 = scmp.eq.s32.totalorder %s23, 1
      %p74 = por %p72, %p73
      %p75 = scmp.ne.s32.totalorder %s64, %s65
      %p76 = scmp.eq.s32.totalorder %s23, 0
      %p77 = por %p75, %p76
      %p78 = scmp.ne.s32.totalorder %s64, %s65
      %p79 = scmp.eq.s32.totalorder %s24, 1
      %p80 = por %p78, %p79
      %p82 = scmp.ne.s32.totalorder %s65, %s81
      %p83 = scmp.eq.s32.totalorder %s24, 0
      %p84 = por %p82, %p83
      %s85 = ssub.s32 %s26, %s33
      %p86 = scmp.eq.s32.totalorder %s85, 0
      %s88 = sadd.s32 %s87, 1
      %s89 = scalar_select %p86, %s87, %s88
      %p92 = pneg %p86
      %p93 = scmp.eq.s32.totalorder %s18, 1
      %p94 = por %p92, %p93
      %p95 = scmp.ne.s32.totalorder %s87, %s90
      %p96 = scmp.eq.s32.totalorder %s18, 0
      %p97 = por %p95, %p96
      %p98 = scmp.ne.s32.totalorder %s87, %s90
      %p99 = scmp.eq.s32.totalorder %s23, 1
      %p100 = por %p98, %p99
      %p101 = scmp.ne.s32.totalorder %s90, %s91
      %p102 = scmp.eq.s32.totalorder %s23, 0
      %p103 = por %p101, %p102
      %p104 = scmp.ne.s32.totalorder %s90, %s91
      %p105 = scmp.eq.s32.totalorder %s24, 1
      %p106 = por %p104, %p105
      %p108 = scmp.ne.s32.totalorder %s91, %s107
      %p109 = scmp.eq.s32.totalorder %s24, 0
      %p110 = por %p108, %p109
      %s111 = ssub.s32 %s26, %s33
      %p112 = scmp.eq.s32.totalorder %s111, 0
      %s114 = sadd.s32 %s113, 1
      %s115 = scalar_select %p112, %s113, %s114
      %p118 = pneg %p112
      %p119 = scmp.eq.s32.totalorder %s18, 1
      %p120 = por %p118, %p119
      %p121 = scmp.ne.s32.totalorder %s113, %s116
      %p122 = scmp.eq.s32.totalorder %s18, 0
      %p123 = por %p121, %p122
      %p124 = scmp.ne.s32.totalorder %s113, %s116
      %p125 = scmp.eq.s32.totalorder %s23, 1
      %p126 = por %p124, %p125
      %p127 = scmp.ne.s32.totalorder %s116, %s117
      %p128 = scmp.eq.s32.totalorder %s23, 0
      %p129 = por %p127, %p128
      %p130 = scmp.ne.s32.totalorder %s116, %s117
      %p131 = scmp.eq.s32.totalorder %s24, 1
      %p132 = por %p130, %p131
      %p134 = scmp.ne.s32.totalorder %s117, %s133
      %p135 = scmp.eq.s32.totalorder %s24, 0
      %p136 = por %p134, %p135
      %s137 = ssub.s32 %s25, %s37
      %s138 = ssub.s32 %s26, %s33
      %s139 = sor.u32 %s137, %s138
      %p140 = scmp.eq.s32.totalorder %s139, 0
      %s142 = sadd.s32 %s141, 1
      %s143 = scalar_select %p140, %s141, %s142
      %p146 = pneg %p140
      %p147 = scmp.eq.s32.totalorder %s18, 1
      %p148 = por %p146, %p147
      %p149 = scmp.ne.s32.totalorder %s141, %s144
      %p150 = scmp.eq.s32.totalorder %s18, 0
      %p151 = por %p149, %p150
      %p152 = scmp.ne.s32.totalorder %s141, %s144
      %p153 = scmp.eq.s32.totalorder %s23, 1
      %p154 = por %p152, %p153
      %p155 = scmp.ne.s32.totalorder %s144, %s145
      %p156 = scmp.eq.s32.totalorder %s23, 0
      %p157 = por %p155, %p156
      %p158 = scmp.ne.s32.totalorder %s144, %s145
      %p159 = scmp.eq.s32.totalorder %s24, 1
      %p160 = por %p158, %p159
      %p162 = scmp.ne.s32.totalorder %s145, %s161
      %p163 = scmp.eq.s32.totalorder %s24, 0
      %p164 = por %p162, %p163
      %p165 = scmp.le.s32.totalorder 1, %s18
      %p166 = scmp.lt.s32.totalorder %s18, 3
      %p167 = pnand %p165, %p166
      %p168 = pneg %p167
      // Predicated region
      $region9: #{tpu_custom_call.1} parent=5 // pred_check
        _
      $region10: #{tpu_custom_call.1} parent=5 // pred_check_branch
        %170 = sbr.rel (%p167) target = $region12
      $region11: #{tpu_custom_call.1} parent=5 // pred_region
        %s171 = ssub.s32 %s18, 1
        // Predicated region
        $region13: #{tpu_custom_call.1} parent=11 // pred_check
          %p172 = pneg %p51
        $region14: #{tpu_custom_call.1} parent=11 // pred_check_branch
          %174 = sbr.rel (%p172) target = $region16
        $region15: #{tpu_custom_call.1} parent=11 // pred_region
          _
        $region16: #{tpu_custom_call.1} parent=11 // pred_fallthru
          _
        // Predicated region
        $region17: #{tpu_custom_call.1} parent=11 // pred_check
          %p175 = pneg %p103
        $region18: #{tpu_custom_call.1} parent=11 // pred_check_branch
          %177 = sbr.rel (%p175) target = $region20
        $region19: #{tpu_custom_call.1} parent=11 // pred_region
          %s179 = ssub.s32 1024, 1024
          %180 = vsyncadd [#allocation7], %s179
          %s181 = smul.addr %s28, 64
          %s182 = scalar_lea.hbm %s2, %s181
          %s183 = sshll.u32 [#allocation6], 4
          %s184 = int_to_ptr.vmem [resolvable:$true] %s183
          %189 = dma.hbm_to_vmem [thread:$0]  %s182, 1024, %s184, [#allocation7], 64, 64, 4
        $region20: #{tpu_custom_call.1} parent=11 // pred_fallthru
          _
        // Predicated region
        $region21: #{tpu_custom_call.1} parent=11 // pred_check
          %p190 = pneg %p129
        $region22: #{tpu_custom_call.1} parent=11 // pred_check_branch
          %192 = sbr.rel (%p190) target = $region24
        $region23: #{tpu_custom_call.1} parent=11 // pred_region
          %p193 = scmp.lt.s32.totalorder %s28, 0
          %s194 = scalar_select %p193, %s28, 0
          %s195 = scalar_lea.vmem %s3, %s194
        $region24: #{tpu_custom_call.1} parent=11 // pred_fallthru
          _
      $region12: #{tpu_custom_call.1} parent=5 // pred_fallthru
        _
      %p196 = scmp.lt.s32.totalorder %s18, 2
      // Predicated region
      $region25: #{tpu_custom_call.1} parent=5 // pred_check
        %p197 = pneg %p196
      $region26: #{tpu_custom_call.1} parent=5 // pred_check_branch
        %199 = sbr.rel (%p197) target = $region28
      $region27: #{tpu_custom_call.1} parent=5 // pred_region
        // Predicated region
        $region29: #{tpu_custom_call.1} parent=27 // pred_check
          %p200 = pneg %p71
        $region30: #{tpu_custom_call.1} parent=27 // pred_check_branch
          %202 = sbr.rel (%p200) target = $region32
        $region31: #{tpu_custom_call.1} parent=27 // pred_region
          %s203 = sand.u32 %s61, 1
          %s204 = scalar_lea.sflag [#allocation4], %s203
          %s205 = sand.u32 %s61, 1
          %s206 = smul.addr %s205, 8
          %s207 = scalar_lea.vmem [#allocation3], %s206
          %s209 = ssub.s32 128, 128
          %210 = vsyncadd %s204, %s209
          %s211 = smul.addr %s25, 128
          %s212 = scalar_lea.hbm %s1, %s211
          %s214 = sshll.u32 %s207, 4
          %s215 = int_to_ptr.vmem [resolvable:$true] %s214
          %217 = dma.hbm_to_vmem [thread:$0]  %s212, 128, %s215, %s204
        $region32: #{tpu_custom_call.1} parent=27 // pred_fallthru
          _
      $region28: #{tpu_custom_call.1} parent=5 // pred_fallthru
        _
      %p218 = scmp.le.s32.totalorder 1, %s18
      %p219 = scmp.lt.s32.totalorder %s18, 3
      %p220 = pnand %p218, %p219
      %p221 = pneg %p220
      // Predicated region
      $region33: #{tpu_custom_call.1} parent=5 // pred_check
        _
      $region34: #{tpu_custom_call.1} parent=5 // pred_check_branch
        %223 = sbr.rel (%p220) target = $region36
      $region35: #{tpu_custom_call.1} parent=5 // pred_region
        %s224 = ssub.s32 %s18, 1
        %s225 = sand.u32 %s64, 1
        %s226 = scalar_lea.sflag [#allocation4], %s225
        %s227 = sand.u32 %s64, 1
        %s228 = smul.addr %s227, 8
        %s229 = scalar_lea.vmem [#allocation3], %s228
        // Predicated region
        $region37: #{tpu_custom_call.1} parent=35 // pred_check
          %p230 = pneg %p77
        $region38: #{tpu_custom_call.1} parent=35 // pred_check_branch
          %232 = sbr.rel (%p230) target = $region40
        $region39: #{tpu_custom_call.1} parent=35 // pred_region
          %233 = dma.done %s226, 128
        $region40: #{tpu_custom_call.1} parent=35 // pred_fallthru
          _
        // Predicated region
        $region41: #{tpu_custom_call.1} parent=35 // pred_check
          %p234 = pneg %p103
        $region42: #{tpu_custom_call.1} parent=35 // pred_check_branch
          %236 = sbr.rel (%p234) target = $region44
        $region43: #{tpu_custom_call.1} parent=35 // pred_region
          %237 = dma.done [#allocation7], 1024
        $region44: #{tpu_custom_call.1} parent=35 // pred_fallthru
          _
        %p238 = pneg %p51
        %p239 = pneg %p48
        %s240 = sand.u32 %s64, 1
        %s241 = scalar_lea.sflag [#allocation4], %s240
        %s242 = sand.u32 %s64, 1
        %s243 = smul.addr %s242, 8
        %s244 = scalar_lea.vmem [#allocation3], %s243
        %p245 = pneg %p77
        %p246 = pneg %p74
        %p247 = pneg %p103
        %p248 = pneg %p100
        %p249 = scmp.lt.s32.totalorder %s28, 0
        %s250 = scalar_select %p249, %s28, 0
        %s251 = scalar_lea.vmem %s3, %s250
        %p252 = pneg %p129
        %p253 = pneg %p126
        %p254 = pneg %p157
        %p255 = pneg %p154
        %s256 = sand.u32 %s144, 1
        %s257 = scalar_lea.sflag [#allocation5], %s256
        %s258 = sand.u32 %s144, 1
        %s259 = smul.addr %s258, 8
        %s260 = scalar_lea.vmem [#allocation8], %s259
        %p261 = scmp.lt.s32.totalorder %s28, 0
        %s262 = scalar_select %p261, %s28, 0
        %s263 = scalar_lea.vmem %s3, %s262
        %v265 = vld [vmem:[%s229] sm:$0xff]
        %v266 = vpack.c.bf16 %v265, %v265
        %v267 = vld [vmem:[#allocation6] sm:$0xf]
        %v268 = vld [vmem:[#allocation6 + $0x4] sm:$0xf]
        %v269 = vld [vmem:[#allocation6 + $0x8] sm:$0xf]
        %v270 = vld [vmem:[#allocation6 + $0xc] sm:$0xf]
        %v271 = vld [vmem:[#allocation6 + $0x10] sm:$0xf]
        %v272 = vld [vmem:[#allocation6 + $0x14] sm:$0xf]
        %v273 = vld [vmem:[#allocation6 + $0x18] sm:$0xf]
        %v274 = vld [vmem:[#allocation6 + $0x1c] sm:$0xf]
        %v275 = vld [vmem:[#allocation6 + $0x20] sm:$0xf]
        %v276 = vld [vmem:[#allocation6 + $0x24] sm:$0xf]
        %v277 = vld [vmem:[#allocation6 + $0x28] sm:$0xf]
        %v278 = vld [vmem:[#allocation6 + $0x2c] sm:$0xf]
        %v279 = vld [vmem:[#allocation6 + $0x30] sm:$0xf]
        %v280 = vld [vmem:[#allocation6 + $0x34] sm:$0xf]
        %v281 = vld [vmem:[#allocation6 + $0x38] sm:$0xf]
        %v282 = vld [vmem:[#allocation6 + $0x3c] sm:$0xf]
        %v283 = vld [vmem:[%s263] sm:$0x1]
        %v285 = vlaneseq
        %v286 = vshrl.u32 %v285, 7
        %v287 = vsub.s32 0, %v286
        %v288 = vrot.slane %v283, %v287
        %v306 = vunpack.c.l.b16 %v267
        %v307 = vunpack.c.l.b16 %v268
        %v308 = vunpack.c.l.b16 %v269
        %v309 = vunpack.c.l.b16 %v270
        %v310 = vunpack.c.l.b16 %v271
        %v311 = vunpack.c.l.b16 %v272
        %v312 = vunpack.c.l.b16 %v273
        %v313 = vunpack.c.l.b16 %v274
        %v314 = vunpack.c.l.b16 %v275
        %v315 = vunpack.c.l.b16 %v276
        %v316 = vunpack.c.l.b16 %v277
        %v317 = vunpack.c.l.b16 %v278
        %v318 = vunpack.c.l.b16 %v279
        %v319 = vunpack.c.l.b16 %v280
        %v320 = vunpack.c.l.b16 %v281
        %v321 = vunpack.c.l.b16 %v282
        %v322 = vpack.c.b16 %v307, %v306
        %v323 = vpack.c.b16 %v309, %v308
        %v324 = vpack.c.b16 %v311, %v310
        %v325 = vpack.c.b16 %v313, %v312
        %v326 = vpack.c.b16 %v315, %v314
        %v327 = vpack.c.b16 %v317, %v316
        %v328 = vpack.c.b16 %v319, %v318
        %v329 = vpack.c.b16 %v321, %v320
        %338 = vmatprep.subr.bf16.mxu0 0
        %339 = vmatpush1.bf16.msra.mxu0 %v322
        %340 = vmatprep.subr.bf16.mxu0 0
        %341 = vmatpush1.bf16.msra.mxu0 %v323
        %342 = vmatprep.subr.bf16.mxu0 0
        %343 = vmatpush1.bf16.msra.mxu0 %v324
        %344 = vmatprep.subr.bf16.mxu0 0
        %345 = vmatpush1.bf16.msra.mxu0 %v325
        %346 = vmatprep.subr.bf16.mxu0 0
        %347 = vmatpush1.bf16.msra.mxu0 %v326
        %348 = vmatprep.subr.bf16.mxu0 0
        %349 = vmatpush1.bf16.msra.mxu0 %v327
        %350 = vmatprep.subr.bf16.mxu0 0
        %351 = vmatpush1.bf16.msra.mxu0 %v328
        %352 = vmatprep.subr.bf16.mxu0 0
        %353 = vmatpush1.bf16.msra.mxu0 %v329
        %354 = vmatprep.subr.bf16.mxu0 0
        %355 = vmatpush1.bf16.msra.mxu0 0
        %356 = vmatprep.subr.bf16.mxu0 0
        %357 = vmatpush1.bf16.msra.mxu0 0
        %358 = vmatprep.subr.bf16.mxu0 0
        %359 = vmatpush1.bf16.msra.mxu0 0
        %360 = vmatprep.subr.bf16.mxu0 0
        %361 = vmatpush1.bf16.msra.mxu0 0
        %362 = vmatprep.subr.bf16.mxu0 0
        %363 = vmatpush1.bf16.msra.mxu0 0
        %364 = vmatprep.subr.bf16.mxu0 0
        %365 = vmatpush1.bf16.msra.mxu0 0
        %366 = vmatprep.subr.bf16.mxu0 0
        %367 = vmatpush1.bf16.msra.mxu0 0
        %368 = vmatprep.subr.bf16.mxu0 0
        %369 = vmatpush1.bf16.msra.mxu0 0
        %370 = vmatprep.mubr.bf16.mxu0 0
        %371 = vmatmul.mubr.bf16.gmra.mrb[0].mxu0 %v266
        %v372 = vpop.f32.mrb[0].mxu0
        %v373 = vadd.f32 %v288, %v372
        %v374 = vpop.f32.mrb[0].mxu0
        %v375 = vpop.f32.mrb[0].mxu0
        %v376 = vpop.f32.mrb[0].mxu0
        %377 = vdwg.mxu0
        %378 = vst [vmem:[%s260] sm:$0xff] %v373
        %s379 = sand.u32 %s144, 1
        %s380 = scalar_lea.sflag [#allocation5], %s379
        %s381 = sand.u32 %s144, 1
        %s382 = smul.addr %s381, 8
        %s383 = scalar_lea.vmem [#allocation8], %s382
        // Predicated region
        $region45: #{tpu_custom_call.1} parent=35 // pred_check
          %p384 = pneg %p154
        $region46: #{tpu_custom_call.1} parent=35 // pred_check_branch
          %386 = sbr.rel (%p384) target = $region48
        $region47: #{tpu_custom_call.1} parent=35 // pred_region
          %s388 = ssub.s32 128, 128
          %389 = vsyncadd %s380, %s388
          %s390 = sadd.s32 %s28, %s27
          %s391 = smul.addr %s390, 128
          %s392 = scalar_lea.hbm %s4, %s391
          %s394 = sshll.u32 %s383, 4
          %s395 = int_to_ptr.vmem [resolvable:$true] %s394
          %397 = dma.vmem_to_hbm [thread:$0]  %s395, 128, %s392, %s380
        $region48: #{tpu_custom_call.1} parent=35 // pred_fallthru
          _
      $region36: #{tpu_custom_call.1} parent=5 // pred_fallthru
        _
      %p398 = scmp.le.s32.totalorder 2, %s18
      // Predicated region
      $region49: #{tpu_custom_call.1} parent=5 // pred_check
        %p399 = pneg %p398
      $region50: #{tpu_custom_call.1} parent=5 // pred_check_branch
        %401 = sbr.rel (%p399) target = $region52
      $region51: #{tpu_custom_call.1} parent=5 // pred_region
        %s402 = ssub.s32 %s18, 2
        // Predicated region
        $region53: #{tpu_custom_call.1} parent=51 // pred_check
          %p403 = pneg %p160
        $region54: #{tpu_custom_call.1} parent=51 // pred_check_branch
          %405 = sbr.rel (%p403) target = $region56
        $region55: #{tpu_custom_call.1} parent=51 // pred_region
          %s406 = sand.u32 %s145, 1
          %s407 = scalar_lea.sflag [#allocation5], %s406
          %s408 = sand.u32 %s145, 1
          %s409 = smul.addr %s408, 8
          %s410 = scalar_lea.vmem [#allocation8], %s409
          %411 = dma.done %s407, 128
        $region56: #{tpu_custom_call.1} parent=51 // pred_fallthru
          _
      $region52: #{tpu_custom_call.1} parent=5 // pred_fallthru
        _
    $region6: #{tpu_custom_call.1} parent=1 // loop_footer
      %s22 = sadd.s32 1, %s18
    $region7: #{tpu_custom_call.1} parent=1 // loop_footer_branch
      %17 = sbr.rel target = $region3
    $region8: #{tpu_custom_call.1} parent=1 // loop_exit
      _
    %412 = vsyncpa [#allocation4], 1
    %s413 = scalar_lea.sflag [#allocation4], 1
    %414 = vsyncpa %s413, 1
    %415 = vsyncpa [#allocation7], 1
    %416 = vsyncpa [#allocation5], 1
    %s417 = scalar_lea.sflag [#allocation5], 1
    %418 = vsyncpa %s417, 1

</llo_original>
